<compile_context>
chip_gen: v5e
topology: v5e:2x2
jax: 0.10.0
libtpu: 0.0.40
codegen_flags: <defaults>
</compile_context>

<pallas_src>
import jax
import jax.numpy as jnp
from jax.experimental import pallas as pl
from jax.experimental.pallas import tpu as pltpu


def lstm_decoder_kernel(z_ref, wih_ref, whh_ref, b_ref, out_ref):
    H = whh_ref.shape[0]
    seq_len = out_ref.shape[1] // H
    TB = z_ref.shape[0]

    # Hoist all VMEM -> vreg loads out of the recurrence.
    wih = wih_ref[...]            # (latent_dim, 4H)  columns ordered (i,f,o,g)
    whh = whh_ref[...]            # (H, 4H)           columns ordered (i,f,o,g)
    bias = b_ref[...]             # (1, 4H)

    # Input projection — identical for every timestep since z is repeated.
    x_proj = jnp.dot(z_ref[...], wih, preferred_element_type=jnp.float32) + bias

    h = jnp.zeros((TB, H), jnp.float32)
    c = jnp.zeros((TB, H), jnp.float32)

    # seq_len is a compile-time constant: fully unrolled recurrence, all slices
    # static, per-step lane-static output stores (no epilogue concat).
    for t in range(seq_len):
        gates = x_proj + jnp.dot(h, whh, preferred_element_type=jnp.float32)  # (TB, 4H)
        # Gate layout after the one-time column permutation: (i, f, o, g).
        # One sigmoid push over the gates tile (4H = 128 lanes = one vreg at
        # this size; only lanes 0:3H are consumed), one tanh push over the
        # last H lanes only.
        sig = jax.nn.sigmoid(gates)
        i_g = sig[:, 0:H]
        f_g = sig[:, H:2 * H]
        o_g = sig[:, 2 * H:3 * H]
        g_g = jnp.tanh(gates[:, 3 * H:4 * H])
        c = f_g * c + i_g * g_g
        h = o_g * jnp.tanh(c)
        out_ref[:, t * H:(t + 1) * H] = h.astype(out_ref.dtype)


def prepare_decoder_params(w_ih, w_hh, b_ih, b_hh):
    """One-time parameter prep (PyTorch-shaped -> kernel layout).

    w_ih: (4H, latent_dim), w_hh: (4H, H), b_ih/b_hh: (4H,), PyTorch gate row
    order (i, f, g, o).  Returns transposed weights / fused bias with gate
    columns permuted to (i, f, o, g) so tanh applies to a single trailing
    lane block inside the kernel.
    """
    H = w_hh.shape[1]
    perm = jnp.concatenate([
        jnp.arange(0, H),          # i
        jnp.arange(H, 2 * H),      # f
        jnp.arange(3 * H, 4 * H),  # o
        jnp.arange(2 * H, 3 * H),  # g
    ])
    wih_t = jnp.transpose(w_ih[perm]).astype(jnp.float32)        # (latent_dim, 4H)
    whh_t = jnp.transpose(w_hh[perm]).astype(jnp.float32)        # (H, 4H)
    bias = (b_ih + b_hh)[perm].reshape(1, 4 * H).astype(jnp.float32)
    return wih_t, whh_t, bias


def semantic_decoder_forward(z, wih_t, whh_t, bias, seq_len):
    """z: (B, latent_dim). Returns (B, seq_len, H) matching
    nn.LSTM(batch_first=True) output on the repeated z."""
    B, latent_dim = z.shape
    H = whh_t.shape[0]

    # Pad batch to fill f32 sublanes (multiple of 8), tile at <=128 rows.
    TB = min(128, ((B + 7) // 8) * 8)
    B_pad = ((B + TB - 1) // TB) * TB
    z_f32 = z.astype(jnp.float32)
    if B_pad != B:
        z_f32 = jnp.zeros((B_pad, latent_dim), jnp.float32).at[:B].set(z_f32)

    out_flat = pl.pallas_call(
        lstm_decoder_kernel,
        out_shape=jax.ShapeDtypeStruct((B_pad, seq_len * H), jnp.float32),
        grid=(B_pad // TB,),
        in_specs=[
            pl.BlockSpec((TB, latent_dim), lambda i: (i, 0)),     # z batch tile
            pl.BlockSpec((latent_dim, 4 * H), lambda i: (0, 0)),  # W_ih resident
            pl.BlockSpec((H, 4 * H), lambda i: (0, 0)),           # W_hh resident
            pl.BlockSpec((1, 4 * H), lambda i: (0, 0)),           # bias resident
        ],
        out_specs=pl.BlockSpec((TB, seq_len * H), lambda i: (i, 0)),
        compiler_params=pltpu.CompilerParams(
            dimension_semantics=("parallel",)),
    )(z_f32, wih_t, whh_t, bias)

    # Row-major contiguous reshape: timestep-major within each batch row.
    return out_flat[:B].reshape(B, seq_len, H)


def _reference_forward(z, w_ih, w_hh, b_ih, b_hh, seq_len):
    """Pure-JAX reference mirroring torch.nn.LSTM semantics (gate order i,f,g,o)."""
    B, _ = z.shape
    H = w_hh.shape[1]
    h = jnp.zeros((B, H), jnp.float32)
    c = jnp.zeros((B, H), jnp.float32)
    outs = []
    for _ in range(seq_len):
        gates = z @ w_ih.T + b_ih + h @ w_hh.T + b_hh
        i_g = jax.nn.sigmoid(gates[:, 0:H])
        f_g = jax.nn.sigmoid(gates[:, H:2 * H])
        g_g = jnp.tanh(gates[:, 2 * H:3 * H])
        o_g = jax.nn.sigmoid(gates[:, 3 * H:4 * H])
        c = f_g * c + i_g * g_g
        h = o_g * jnp.tanh(c)
        outs.append(h)
    return jnp.stack(outs, axis=1)


if __name__ == "__main__":
    # Small shapes consistent with the module's forward.
    B = 2
    latent_dim = 32
    output_dim = 32   # LSTM hidden size
    seq_len = 8

    key = jax.random.PRNGKey(0)
    k_z, k_wih, k_whh, k_bih, k_bhh = jax.random.split(key, 5)

    # Deterministic PyTorch-style uniform(-1/sqrt(H), 1/sqrt(H)) init.
    bound = 1.0 / jnp.sqrt(jnp.float32(output_dim))
    w_ih = jax.random.uniform(k_wih, (4 * output_dim, latent_dim),
                              jnp.float32, -bound, bound)
    w_hh = jax.random.uniform(k_whh, (4 * output_dim, output_dim),
                              jnp.float32, -bound, bound)
    b_ih = jax.random.uniform(k_bih, (4 * output_dim,), jnp.float32, -bound, bound)
    b_hh = jax.random.uniform(k_bhh, (4 * output_dim,), jnp.float32, -bound, bound)

    z = jax.random.normal(k_z, (B, latent_dim), jnp.float32)

    # One-time parameter prep (weights are static across forwards).
    wih_t, whh_t, bias = prepare_decoder_params(w_ih, w_hh, b_ih, b_hh)

    out = semantic_decoder_forward(z, wih_t, whh_t, bias, seq_len)
    out = jax.block_until_ready(out)

    ref = _reference_forward(z, w_ih, w_hh, b_ih, b_hh, seq_len)
    assert out.shape == (B, seq_len, output_dim), out.shape
    assert jnp.allclose(out, ref, atol=1e-5, rtol=1e-5), "mismatch vs reference"

    print("KERNEL_OK")
</pallas_src>

<mosaic_0001>
module attributes {stable_mosaic.version = 11 : i64} {
  func.func @lstm_decoder_kernel(%arg0: i32, %arg1: memref<8x32xf32, #tpu.memory_space<vmem>>, %arg2: memref<32x128xf32, #tpu.memory_space<vmem>>, %arg3: memref<32x128xf32, #tpu.memory_space<vmem>>, %arg4: memref<1x128xf32, #tpu.memory_space<vmem>>, %arg5: memref<8x256xf32, #tpu.memory_space<vmem>>) attributes {dimension_semantics = [#tpu.dimension_semantics<parallel>], iteration_bounds = array<i64: 1>, scalar_prefetch = 0 : i64, scratch_operands = 0 : i64, tpu.core_type = #tpu.core_type<tc>, window_params = [{transform_indices = @transform_0, window_bounds = array<i64: 8, 32>}, {pipeline_mode = #tpu.pipeline_mode<synchronous>, transform_indices = @transform_1, window_bounds = array<i64: 32, 128>}, {pipeline_mode = #tpu.pipeline_mode<synchronous>, transform_indices = @transform_2, window_bounds = array<i64: 32, 128>}, {pipeline_mode = #tpu.pipeline_mode<synchronous>, transform_indices = @transform_3, window_bounds = array<i64: 1, 128>}, {transform_indices = @transform_4, window_bounds = array<i64: 8, 256>}]} {
    %c0 = arith.constant 0 : index
    %c0_0 = arith.constant 0 : index
    %0 = vector.load %arg2[%c0, %c0_0] : memref<32x128xf32, #tpu.memory_space<vmem>>, vector<32x128xf32>
    %c0_1 = arith.constant 0 : index
    %c0_2 = arith.constant 0 : index
    %1 = vector.load %arg3[%c0_1, %c0_2] : memref<32x128xf32, #tpu.memory_space<vmem>>, vector<32x128xf32>
    %c0_3 = arith.constant 0 : index
    %c0_4 = arith.constant 0 : index
    %2 = vector.load %arg4[%c0_3, %c0_4] : memref<1x128xf32, #tpu.memory_space<vmem>>, vector<1x128xf32>
    %c0_5 = arith.constant 0 : index
    %c0_6 = arith.constant 0 : index
    %3 = vector.load %arg1[%c0_5, %c0_6] : memref<8x32xf32, #tpu.memory_space<vmem>>, vector<8x32xf32>
    %cst = arith.constant dense<0.000000e+00> : vector<8x128xf32>
    %4 = tpu.matmul %3, %0, %cst {dimension_numbers = #tpu.dot_dimension_numbers<[1], [0], [0], [1], [0, 0, 1, 1], [], []>} : vector<8x32xf32>, vector<32x128xf32>, vector<8x128xf32> -> vector<8x128xf32>
    %5 = vector.broadcast %2 : vector<1x128xf32> to vector<8x128xf32>
    %6 = arith.addf %4, %5 : vector<8x128xf32>
    %cst_7 = arith.constant 0.000000e+00 : f32
    %7 = vector.broadcast %cst_7 : f32 to vector<8x32xf32>
    %cst_8 = arith.constant 0.000000e+00 : f32
    %8 = vector.broadcast %cst_8 : f32 to vector<8x32xf32>
    %cst_9 = arith.constant dense<0.000000e+00> : vector<8x128xf32>
    %9 = tpu.matmul %7, %1, %cst_9 {dimension_numbers = #tpu.dot_dimension_numbers<[1], [0], [0], [1], [0, 0, 1, 1], [], []>} : vector<8x32xf32>, vector<32x128xf32>, vector<8x128xf32> -> vector<8x128xf32>
    %10 = arith.addf %6, %9 : vector<8x128xf32>
    %11 = arith.negf %10 : vector<8x128xf32>
    %12 = math.exp %11 : vector<8x128xf32>
    %cst_10 = arith.constant 1.000000e+00 : f32
    %13 = vector.broadcast %cst_10 : f32 to vector<8x128xf32>
    %14 = arith.addf %13, %12 : vector<8x128xf32>
    %15 = arith.divf %13, %14 : vector<8x128xf32>
    %16 = vector.extract_strided_slice %15 {offsets = [0, 0], sizes = [8, 32], strides = [1, 1]} : vector<8x128xf32> to vector<8x32xf32>
    %17 = vector.extract_strided_slice %15 {offsets = [0, 32], sizes = [8, 32], strides = [1, 1]} : vector<8x128xf32> to vector<8x32xf32>
    %18 = vector.extract_strided_slice %15 {offsets = [0, 64], sizes = [8, 32], strides = [1, 1]} : vector<8x128xf32> to vector<8x32xf32>
    %19 = vector.extract_strided_slice %10 {offsets = [0, 96], sizes = [8, 32], strides = [1, 1]} : vector<8x128xf32> to vector<8x32xf32>
    %20 = math.tanh %19 : vector<8x32xf32>
    %21 = arith.mulf %17, %8 : vector<8x32xf32>
    %22 = arith.mulf %16, %20 : vector<8x32xf32>
    %23 = arith.addf %21, %22 : vector<8x32xf32>
    %24 = math.tanh %23 : vector<8x32xf32>
    %25 = arith.mulf %18, %24 : vector<8x32xf32>
    %c0_11 = arith.constant 0 : index
    %c0_12 = arith.constant 0 : index
    %26 = vector.load %arg5[%c0_11, %c0_12] : memref<8x256xf32, #tpu.memory_space<vmem>>, vector<8x32xf32>
    tpu.vector_store %arg5[%c0_11, %c0_12], %25 {strides = array<i32>} : memref<8x256xf32, #tpu.memory_space<vmem>>, vector<8x32xf32>,
    %cst_13 = arith.constant dense<0.000000e+00> : vector<8x128xf32>
    %27 = tpu.matmul %25, %1, %cst_13 {dimension_numbers = #tpu.dot_dimension_numbers<[1], [0], [0], [1], [0, 0, 1, 1], [], []>} : vector<8x32xf32>, vector<32x128xf32>, vector<8x128xf32> -> vector<8x128xf32>
    %28 = arith.addf %6, %27 : vector<8x128xf32>
    %29 = arith.negf %28 : vector<8x128xf32>
    %30 = math.exp %29 : vector<8x128xf32>
    %cst_14 = arith.constant 1.000000e+00 : f32
    %31 = vector.broadcast %cst_14 : f32 to vector<8x128xf32>
    %32 = arith.addf %31, %30 : vector<8x128xf32>
    %33 = arith.divf %31, %32 : vector<8x128xf32>
    %34 = vector.extract_strided_slice %33 {offsets = [0, 0], sizes = [8, 32], strides = [1, 1]} : vector<8x128xf32> to vector<8x32xf32>
    %35 = vector.extract_strided_slice %33 {offsets = [0, 32], sizes = [8, 32], strides = [1, 1]} : vector<8x128xf32> to vector<8x32xf32>
    %36 = vector.extract_strided_slice %33 {offsets = [0, 64], sizes = [8, 32], strides = [1, 1]} : vector<8x128xf32> to vector<8x32xf32>
    %37 = vector.extract_strided_slice %28 {offsets = [0, 96], sizes = [8, 32], strides = [1, 1]} : vector<8x128xf32> to vector<8x32xf32>
    %38 = math.tanh %37 : vector<8x32xf32>
    %39 = arith.mulf %35, %23 : vector<8x32xf32>
    %40 = arith.mulf %34, %38 : vector<8x32xf32>
    %41 = arith.addf %39, %40 : vector<8x32xf32>
    %42 = math.tanh %41 : vector<8x32xf32>
    %43 = arith.mulf %36, %42 : vector<8x32xf32>
    %c0_15 = arith.constant 0 : index
    %c32 = arith.constant 32 : index
    %44 = vector.load %arg5[%c0_15, %c32] : memref<8x256xf32, #tpu.memory_space<vmem>>, vector<8x32xf32>
    tpu.vector_store %arg5[%c0_15, %c32], %43 {strides = array<i32>} : memref<8x256xf32, #tpu.memory_space<vmem>>, vector<8x32xf32>,
    %cst_16 = arith.constant dense<0.000000e+00> : vector<8x128xf32>
    %45 = tpu.matmul %43, %1, %cst_16 {dimension_numbers = #tpu.dot_dimension_numbers<[1], [0], [0], [1], [0, 0, 1, 1], [], []>} : vector<8x32xf32>, vector<32x128xf32>, vector<8x128xf32> -> vector<8x128xf32>
    %46 = arith.addf %6, %45 : vector<8x128xf32>
    %47 = arith.negf %46 : vector<8x128xf32>
    %48 = math.exp %47 : vector<8x128xf32>
    %cst_17 = arith.constant 1.000000e+00 : f32
    %49 = vector.broadcast %cst_17 : f32 to vector<8x128xf32>
    %50 = arith.addf %49, %48 : vector<8x128xf32>
    %51 = arith.divf %49, %50 : vector<8x128xf32>
    %52 = vector.extract_strided_slice %51 {offsets = [0, 0], sizes = [8, 32], strides = [1, 1]} : vector<8x128xf32> to vector<8x32xf32>
    %53 = vector.extract_strided_slice %51 {offsets = [0, 32], sizes = [8, 32], strides = [1, 1]} : vector<8x128xf32> to vector<8x32xf32>
    %54 = vector.extract_strided_slice %51 {offsets = [0, 64], sizes = [8, 32], strides = [1, 1]} : vector<8x128xf32> to vector<8x32xf32>
    %55 = vector.extract_strided_slice %46 {offsets = [0, 96], sizes = [8, 32], strides = [1, 1]} : vector<8x128xf32> to vector<8x32xf32>
    %56 = math.tanh %55 : vector<8x32xf32>
    %57 = arith.mulf %53, %41 : vector<8x32xf32>
    %58 = arith.mulf %52, %56 : vector<8x32xf32>
    %59 = arith.addf %57, %58 : vector<8x32xf32>
    %60 = math.tanh %59 : vector<8x32xf32>
    %61 = arith.mulf %54, %60 : vector<8x32xf32>
    %c0_18 = arith.constant 0 : index
    %c64 = arith.constant 64 : index
    %62 = vector.load %arg5[%c0_18, %c64] : memref<8x256xf32, #tpu.memory_space<vmem>>, vector<8x32xf32>
    tpu.vector_store %arg5[%c0_18, %c64], %61 {strides = array<i32>} : memref<8x256xf32, #tpu.memory_space<vmem>>, vector<8x32xf32>,
    %cst_19 = arith.constant dense<0.000000e+00> : vector<8x128xf32>
    %63 = tpu.matmul %61, %1, %cst_19 {dimension_numbers = #tpu.dot_dimension_numbers<[1], [0], [0], [1], [0, 0, 1, 1], [], []>} : vector<8x32xf32>, vector<32x128xf32>, vector<8x128xf32> -> vector<8x128xf32>
    %64 = arith.addf %6, %63 : vector<8x128xf32>
    %65 = arith.negf %64 : vector<8x128xf32>
    %66 = math.exp %65 : vector<8x128xf32>
    %cst_20 = arith.constant 1.000000e+00 : f32
    %67 = vector.broadcast %cst_20 : f32 to vector<8x128xf32>
    %68 = arith.addf %67, %66 : vector<8x128xf32>
    %69 = arith.divf %67, %68 : vector<8x128xf32>
    %70 = vector.extract_strided_slice %69 {offsets = [0, 0], sizes = [8, 32], strides = [1, 1]} : vector<8x128xf32> to vector<8x32xf32>
    %71 = vector.extract_strided_slice %69 {offsets = [0, 32], sizes = [8, 32], strides = [1, 1]} : vector<8x128xf32> to vector<8x32xf32>
    %72 = vector.extract_strided_slice %69 {offsets = [0, 64], sizes = [8, 32], strides = [1, 1]} : vector<8x128xf32> to vector<8x32xf32>
    %73 = vector.extract_strided_slice %64 {offsets = [0, 96], sizes = [8, 32], strides = [1, 1]} : vector<8x128xf32> to vector<8x32xf32>
    %74 = math.tanh %73 : vector<8x32xf32>
    %75 = arith.mulf %71, %59 : vector<8x32xf32>
    %76 = arith.mulf %70, %74 : vector<8x32xf32>
    %77 = arith.addf %75, %76 : vector<8x32xf32>
    %78 = math.tanh %77 : vector<8x32xf32>
    %79 = arith.mulf %72, %78 : vector<8x32xf32>
    %c0_21 = arith.constant 0 : index
    %c96 = arith.constant 96 : index
    %80 = vector.load %arg5[%c0_21, %c96] : memref<8x256xf32, #tpu.memory_space<vmem>>, vector<8x32xf32>
    tpu.vector_store %arg5[%c0_21, %c96], %79 {strides = array<i32>} : memref<8x256xf32, #tpu.memory_space<vmem>>, vector<8x32xf32>,
    %cst_22 = arith.constant dense<0.000000e+00> : vector<8x128xf32>
    %81 = tpu.matmul %79, %1, %cst_22 {dimension_numbers = #tpu.dot_dimension_numbers<[1], [0], [0], [1], [0, 0, 1, 1], [], []>} : vector<8x32xf32>, vector<32x128xf32>, vector<8x128xf32> -> vector<8x128xf32>
    %82 = arith.addf %6, %81 : vector<8x128xf32>
    %83 = arith.negf %82 : vector<8x128xf32>
    %84 = math.exp %83 : vector<8x128xf32>
    %cst_23 = arith.constant 1.000000e+00 : f32
    %85 = vector.broadcast %cst_23 : f32 to vector<8x128xf32>
    %86 = arith.addf %85, %84 : vector<8x128xf32>
    %87 = arith.divf %85, %86 : vector<8x128xf32>
    %88 = vector.extract_strided_slice %87 {offsets = [0, 0], sizes = [8, 32], strides = [1, 1]} : vector<8x128xf32> to vector<8x32xf32>
    %89 = vector.extract_strided_slice %87 {offsets = [0, 32], sizes = [8, 32], strides = [1, 1]} : vector<8x128xf32> to vector<8x32xf32>
    %90 = vector.extract_strided_slice %87 {offsets = [0, 64], sizes = [8, 32], strides = [1, 1]} : vector<8x128xf32> to vector<8x32xf32>
    %91 = vector.extract_strided_slice %82 {offsets = [0, 96], sizes = [8, 32], strides = [1, 1]} : vector<8x128xf32> to vector<8x32xf32>
    %92 = math.tanh %91 : vector<8x32xf32>
    %93 = arith.mulf %89, %77 : vector<8x32xf32>
    %94 = arith.mulf %88, %92 : vector<8x32xf32>
    %95 = arith.addf %93, %94 : vector<8x32xf32>
    %96 = math.tanh %95 : vector<8x32xf32>
    %97 = arith.mulf %90, %96 : vector<8x32xf32>
    %c0_24 = arith.constant 0 : index
    %c128 = arith.constant 128 : index
    %98 = vector.load %arg5[%c0_24, %c128] : memref<8x256xf32, #tpu.memory_space<vmem>>, vector<8x32xf32>
    tpu.vector_store %arg5[%c0_24, %c128], %97 {strides = array<i32>} : memref<8x256xf32, #tpu.memory_space<vmem>>, vector<8x32xf32>,
    %cst_25 = arith.constant dense<0.000000e+00> : vector<8x128xf32>
    %99 = tpu.matmul %97, %1, %cst_25 {dimension_numbers = #tpu.dot_dimension_numbers<[1], [0], [0], [1], [0, 0, 1, 1], [], []>} : vector<8x32xf32>, vector<32x128xf32>, vector<8x128xf32> -> vector<8x128xf32>
    %100 = arith.addf %6, %99 : vector<8x128xf32>
    %101 = arith.negf %100 : vector<8x128xf32>
    %102 = math.exp %101 : vector<8x128xf32>
    %cst_26 = arith.constant 1.000000e+00 : f32
    %103 = vector.broadcast %cst_26 : f32 to vector<8x128xf32>
    %104 = arith.addf %103, %102 : vector<8x128xf32>
    %105 = arith.divf %103, %104 : vector<8x128xf32>
    %106 = vector.extract_strided_slice %105 {offsets = [0, 0], sizes = [8, 32], strides = [1, 1]} : vector<8x128xf32> to vector<8x32xf32>
    %107 = vector.extract_strided_slice %105 {offsets = [0, 32], sizes = [8, 32], strides = [1, 1]} : vector<8x128xf32> to vector<8x32xf32>
    %108 = vector.extract_strided_slice %105 {offsets = [0, 64], sizes = [8, 32], strides = [1, 1]} : vector<8x128xf32> to vector<8x32xf32>
    %109 = vector.extract_strided_slice %100 {offsets = [0, 96], sizes = [8, 32], strides = [1, 1]} : vector<8x128xf32> to vector<8x32xf32>
    %110 = math.tanh %109 : vector<8x32xf32>
    %111 = arith.mulf %107, %95 : vector<8x32xf32>
    %112 = arith.mulf %106, %110 : vector<8x32xf32>
    %113 = arith.addf %111, %112 : vector<8x32xf32>
    %114 = math.tanh %113 : vector<8x32xf32>
    %115 = arith.mulf %108, %114 : vector<8x32xf32>
    %c0_27 = arith.constant 0 : index
    %c160 = arith.constant 160 : index
    %116 = vector.load %arg5[%c0_27, %c160] : memref<8x256xf32, #tpu.memory_space<vmem>>, vector<8x32xf32>
    tpu.vector_store %arg5[%c0_27, %c160], %115 {strides = array<i32>} : memref<8x256xf32, #tpu.memory_space<vmem>>, vector<8x32xf32>,
    %cst_28 = arith.constant dense<0.000000e+00> : vector<8x128xf32>
    %117 = tpu.matmul %115, %1, %cst_28 {dimension_numbers = #tpu.dot_dimension_numbers<[1], [0], [0], [1], [0, 0, 1, 1], [], []>} : vector<8x32xf32>, vector<32x128xf32>, vector<8x128xf32> -> vector<8x128xf32>
    %118 = arith.addf %6, %117 : vector<8x128xf32>
    %119 = arith.negf %118 : vector<8x128xf32>
    %120 = math.exp %119 : vector<8x128xf32>
    %cst_29 = arith.constant 1.000000e+00 : f32
    %121 = vector.broadcast %cst_29 : f32 to vector<8x128xf32>
    %122 = arith.addf %121, %120 : vector<8x128xf32>
    %123 = arith.divf %121, %122 : vector<8x128xf32>
    %124 = vector.extract_strided_slice %123 {offsets = [0, 0], sizes = [8, 32], strides = [1, 1]} : vector<8x128xf32> to vector<8x32xf32>
    %125 = vector.extract_strided_slice %123 {offsets = [0, 32], sizes = [8, 32], strides = [1, 1]} : vector<8x128xf32> to vector<8x32xf32>
    %126 = vector.extract_strided_slice %123 {offsets = [0, 64], sizes = [8, 32], strides = [1, 1]} : vector<8x128xf32> to vector<8x32xf32>
    %127 = vector.extract_strided_slice %118 {offsets = [0, 96], sizes = [8, 32], strides = [1, 1]} : vector<8x128xf32> to vector<8x32xf32>
    %128 = math.tanh %127 : vector<8x32xf32>
    %129 = arith.mulf %125, %113 : vector<8x32xf32>
    %130 = arith.mulf %124, %128 : vector<8x32xf32>
    %131 = arith.addf %129, %130 : vector<8x32xf32>
    %132 = math.tanh %131 : vector<8x32xf32>
    %133 = arith.mulf %126, %132 : vector<8x32xf32>
    %c0_30 = arith.constant 0 : index
    %c192 = arith.constant 192 : index
    %134 = vector.load %arg5[%c0_30, %c192] : memref<8x256xf32, #tpu.memory_space<vmem>>, vector<8x32xf32>
    tpu.vector_store %arg5[%c0_30, %c192], %133 {strides = array<i32>} : memref<8x256xf32, #tpu.memory_space<vmem>>, vector<8x32xf32>,
    %cst_31 = arith.constant dense<0.000000e+00> : vector<8x128xf32>
    %135 = tpu.matmul %133, %1, %cst_31 {dimension_numbers = #tpu.dot_dimension_numbers<[1], [0], [0], [1], [0, 0, 1, 1], [], []>} : vector<8x32xf32>, vector<32x128xf32>, vector<8x128xf32> -> vector<8x128xf32>
    %136 = arith.addf %6, %135 : vector<8x128xf32>
    %137 = arith.negf %136 : vector<8x128xf32>
    %138 = math.exp %137 : vector<8x128xf32>
    %cst_32 = arith.constant 1.000000e+00 : f32
    %139 = vector.broadcast %cst_32 : f32 to vector<8x128xf32>
    %140 = arith.addf %139, %138 : vector<8x128xf32>
    %141 = arith.divf %139, %140 : vector<8x128xf32>
    %142 = vector.extract_strided_slice %141 {offsets = [0, 0], sizes = [8, 32], strides = [1, 1]} : vector<8x128xf32> to vector<8x32xf32>
    %143 = vector.extract_strided_slice %141 {offsets = [0, 32], sizes = [8, 32], strides = [1, 1]} : vector<8x128xf32> to vector<8x32xf32>
    %144 = vector.extract_strided_slice %141 {offsets = [0, 64], sizes = [8, 32], strides = [1, 1]} : vector<8x128xf32> to vector<8x32xf32>
    %145 = vector.extract_strided_slice %136 {offsets = [0, 96], sizes = [8, 32], strides = [1, 1]} : vector<8x128xf32> to vector<8x32xf32>
    %146 = math.tanh %145 : vector<8x32xf32>
    %147 = arith.mulf %143, %131 : vector<8x32xf32>
    %148 = arith.mulf %142, %146 : vector<8x32xf32>
    %149 = arith.addf %147, %148 : vector<8x32xf32>
    %150 = math.tanh %149 : vector<8x32xf32>
    %151 = arith.mulf %144, %150 : vector<8x32xf32>
    %c0_33 = arith.constant 0 : index
    %c224 = arith.constant 224 : index
    %152 = vector.load %arg5[%c0_33, %c224] : memref<8x256xf32, #tpu.memory_space<vmem>>, vector<8x32xf32>
    tpu.vector_store %arg5[%c0_33, %c224], %151 {strides = array<i32>} : memref<8x256xf32, #tpu.memory_space<vmem>>, vector<8x32xf32>,
    return
  }
  func.func @transform_0(%arg0: i32) -> (i32, i32) {
    %c0_i32 = arith.constant 0 : i32
    %c0_i32_0 = arith.constant 0 : i32
    return %arg0, %c0_i32 : i32, i32
  }
  func.func @transform_1(%arg0: i32) -> (i32, i32) {
    %c0_i32 = arith.constant 0 : i32
    %c0_i32_0 = arith.constant 0 : i32
    %c0_i32_1 = arith.constant 0 : i32
    return %c0_i32, %c0_i32_0 : i32, i32
  }
  func.func @transform_2(%arg0: i32) -> (i32, i32) {
    %c0_i32 = arith.constant 0 : i32
    %c0_i32_0 = arith.constant 0 : i32
    %c0_i32_1 = arith.constant 0 : i32
    return %c0_i32, %c0_i32_0 : i32, i32
  }
  func.func @transform_3(%arg0: i32) -> (i32, i32) {
    %c0_i32 = arith.constant 0 : i32
    %c0_i32_0 = arith.constant 0 : i32
    %c0_i32_1 = arith.constant 0 : i32
    return %c0_i32, %c0_i32_0 : i32, i32
  }
  func.func @transform_4(%arg0: i32) -> (i32, i32) {
    %c0_i32 = arith.constant 0 : i32
    %c0_i32_0 = arith.constant 0 : i32
    return %arg0, %c0_i32 : i32, i32
  }
}

</mosaic_0001>

<llo_original>
// kernel: tpu_custom_call.1
$region0: #{tpu_custom_call.1}
  #allocation0 [shape = 'u32[]', space=smem, size = 0x4, offset = 0x4, fixed_abs, tag = 'smem constant byte address 0x4 - core index']
  #allocation1 [shape = 'u32[72,128]{1,0:T(1,128)}', space=vmem, size = 0x9000, scoped, tag = 'internal scratch']
  %s0 = inlined_call_operand.hbm [shape: f32[8,32], index: 0, kind: input, shape index: {}]
  %s1 = inlined_call_operand.hbm [shape: f32[32,128], index: 1, kind: input, shape index: {}]
  %s2 = inlined_call_operand.hbm [shape: f32[32,128], index: 2, kind: input, shape index: {}]
  %s3 = inlined_call_operand.vmem [shape: f32[1,128], index: 3, kind: input, shape index: {}]
  %s4 = inlined_call_operand.hbm [shape: f32[8,256], index: 4, kind: output, shape index: {}]
  %s5 = sld [smem:[#allocation0]]
  $region38: #{tpu_custom_call.1} parent=0
    _
  %s7 = ssub.s32 1, %s5
  %s8 = scalar_select 0, %s7, %s5
  $region1: #{tpu_custom_call.1} parent=0
    #allocation2 [shape = 'u8[4096]{0}', space=vmem, size = 0x1000, scoped, tag = 'input window, operand 0, single buffered']
    #allocation3 [shape = 's32[1]{0}', space=sflag, size = 0x4, scoped, tag = 'scoped memory for tpu_custom_call.1']
    #allocation4 [shape = 's32[1]{0}', space=sflag, size = 0x4, scoped, tag = 'scoped memory for tpu_custom_call.1']
    #allocation5 [shape = 'u8[16384]{0}', space=vmem, size = 0x4000, scoped, tag = 'input window, operand 1, single buffered']
    #allocation6 [shape = 's32[1]{0}', space=sflag, size = 0x4, scoped, tag = 'scoped memory for tpu_custom_call.1']
    #allocation7 [shape = 'u8[16384]{0}', space=vmem, size = 0x4000, scoped, tag = 'input window, operand 2, single buffered']
    #allocation8 [shape = 'u8[8192]{0}', space=vmem, size = 0x2000, scoped, tag = 'output window, operand 0, single buffered']
    %9 = vsyncpa [#allocation3], 0
    %10 = vsyncpa [#allocation6], 0
    %11 = vsyncpa [#allocation4], 0
    // Predicated region
    $region2: #{tpu_custom_call.1} parent=1 // pred_check
      _
    $region3: #{tpu_custom_call.1} parent=1 // pred_check_branch
      %13 = sbr.rel (0) target = $region5
    $region4: #{tpu_custom_call.1} parent=1 // pred_region
      %15 = vsyncadd [#allocation3], 0
      %s17 = sshll.u32 %s0, 4
      %s18 = int_to_ptr.hbm [resolvable:$true] %s17
      %s19 = sshll.u32 [#allocation2], 4
      %s20 = int_to_ptr.vmem [resolvable:$true] %s19
      %22 = dma.hbm_to_vmem [thread:$0]  %s18, 128, %s20, [#allocation3]
    $region5: #{tpu_custom_call.1} parent=1 // pred_fallthru
      _
    // Predicated region
    $region6: #{tpu_custom_call.1} parent=1 // pred_check
      _
    $region7: #{tpu_custom_call.1} parent=1 // pred_check_branch
      %24 = sbr.rel (0) target = $region9
    $region8: #{tpu_custom_call.1} parent=1 // pred_region
      %26 = vsyncadd [#allocation6], 0
      %s27 = sshll.u32 %s1, 4
      %s28 = int_to_ptr.hbm [resolvable:$true] %s27
      %s29 = sshll.u32 [#allocation5], 4
      %s30 = int_to_ptr.vmem [resolvable:$true] %s29
      %35 = dma.hbm_to_vmem [thread:$0]  %s28, 512, %s30, [#allocation6], 128, 128, 8
    $region9: #{tpu_custom_call.1} parent=1 // pred_fallthru
      _
    // Predicated region
    $region10: #{tpu_custom_call.1} parent=1 // pred_check
      _
    $region11: #{tpu_custom_call.1} parent=1 // pred_check_branch
      %37 = sbr.rel (0) target = $region13
    $region12: #{tpu_custom_call.1} parent=1 // pred_region
      %39 = vsyncadd [#allocation6], 0
      %s40 = sshll.u32 %s2, 4
      %s41 = int_to_ptr.hbm [resolvable:$true] %s40
      %s42 = sshll.u32 [#allocation7], 4
      %s43 = int_to_ptr.vmem [resolvable:$true] %s42
      %48 = dma.hbm_to_vmem [thread:$0]  %s41, 512, %s43, [#allocation6], 128, 128, 8
    $region13: #{tpu_custom_call.1} parent=1 // pred_fallthru
      _
    // Predicated region
    $region14: #{tpu_custom_call.1} parent=1 // pred_check
      _
    $region15: #{tpu_custom_call.1} parent=1 // pred_check_branch
      %50 = sbr.rel (0) target = $region17
    $region16: #{tpu_custom_call.1} parent=1 // pred_region
      _
    $region17: #{tpu_custom_call.1} parent=1 // pred_fallthru
      _
    // Predicated region
    $region18: #{tpu_custom_call.1} parent=1 // pred_check
      _
    $region19: #{tpu_custom_call.1} parent=1 // pred_check_branch
      %52 = sbr.rel (0) target = $region21
    $region20: #{tpu_custom_call.1} parent=1 // pred_region
      %54 = dma.done [#allocation3], 128
    $region21: #{tpu_custom_call.1} parent=1 // pred_fallthru
      _
    // Predicated region
    $region22: #{tpu_custom_call.1} parent=1 // pred_check
      _
    $region23: #{tpu_custom_call.1} parent=1 // pred_check_branch
      %56 = sbr.rel (0) target = $region25
    $region24: #{tpu_custom_call.1} parent=1 // pred_region
      %58 = dma.done [#allocation6], 512
    $region25: #{tpu_custom_call.1} parent=1 // pred_fallthru
      _
    // Predicated region
    $region26: #{tpu_custom_call.1} parent=1 // pred_check
      _
    $region27: #{tpu_custom_call.1} parent=1 // pred_check_branch
      %60 = sbr.rel (0) target = $region29
    $region28: #{tpu_custom_call.1} parent=1 // pred_region
      %62 = dma.done [#allocation6], 512
    $region29: #{tpu_custom_call.1} parent=1 // pred_fallthru
      _
    %v63 = vld [vmem:[#allocation5] sm:$0xff]
    %v64 = vld [vmem:[#allocation5 + $0x8] sm:$0xff]
    %v65 = vld [vmem:[#allocation5 + $0x10] sm:$0xff]
    %v66 = vld [vmem:[#allocation5 + $0x18] sm:$0xff]
    %v67 = vld [vmem:[#allocation7] sm:$0xff]
    %v68 = vld [vmem:[#allocation7 + $0x8] sm:$0xff]
    %v69 = vld [vmem:[#allocation7 + $0x10] sm:$0xff]
    %v70 = vld [vmem:[#allocation7 + $0x18] sm:$0xff]
    %v71 = vld [vmem:[%s3] sm:$0x1]
    %v72 = vld [vmem:[#allocation2] sm:$0xff]
    %v74 = vperm.slane %v71, 0
    %vm76 = vcmask 261120
    %v78 = vsel %vm76, %v72, 0
    %80 = vmatpush.msra.mxu0 0.0
    %81 = vmatpush.msra.mxu0 0.0
    %82 = vmatpush.msra.mxu0 0.0
    %83 = vmatpush.msra.mxu0 0.0
    %84 = vmatpush.msra.mxu0 0.0
    %85 = vmatpush.msra.mxu0 0.0
    %86 = vmatpush.msra.mxu0 0.0
    %87 = vmatpush.msra.mxu0 0.0
    %88 = vmatpush.msra.mxu0 0.0
    %89 = vmatpush.msra.mxu0 0.0
    %90 = vmatpush.msra.mxu0 0.0
    %91 = vmatpush.msra.mxu0 0.0
    %92 = vmatpush.msra.mxu0 %v66
    %93 = vmatpush.msra.mxu0 %v65
    %94 = vmatpush.msra.mxu0 %v64
    %95 = vmatpush.msra.mxu0 %v63
    %96 = vmatmul.f32.gmra.mxu0 %v78
    %v97 = vpop.f32.mrf.mxu0
    %v98 = vadd.f32 %v74, %v97
    %99 = vdwg.mxu0
    %v101 = vsel %vm76, 0.0, 0
    %103 = vmatpush.msra.mxu0 0.0
    %104 = vmatpush.msra.mxu0 0.0
    %105 = vmatpush.msra.mxu0 0.0
    %106 = vmatpush.msra.mxu0 0.0
    %107 = vmatpush.msra.mxu0 0.0
    %108 = vmatpush.msra.mxu0 0.0
    %109 = vmatpush.msra.mxu0 0.0
    %110 = vmatpush.msra.mxu0 0.0
    %111 = vmatpush.msra.mxu0 0.0
    %112 = vmatpush.msra.mxu0 0.0
    %113 = vmatpush.msra.mxu0 0.0
    %114 = vmatpush.msra.mxu0 0.0
    %115 = vmatpush.msra.mxu0 %v70
    %116 = vmatpush.msra.mxu0 %v69
    %117 = vmatpush.msra.mxu0 %v68
    %118 = vmatpush.msra.mxu0 %v67
    %119 = vmatmul.f32.gmra.mxu0 %v101
    %v120 = vpop.f32.mrf.mxu0
    %v121 = vadd.f32 0.0, %v120
    %122 = vdwg.mxu0
    %v123 = vadd.f32 %v98, %v121
    %v124 = vxor.u32 %v123, 2147483648
    %v125 = vmul.f32 %v124, 1.442695
    %v126 = vpow.pop %v125
    %v127 = vadd.f32 %v126, 1.0
    %v128 = vrcp.pop %v127
    %v129 = vmul.f32 %v127, %v128
    %v130 = vsub.f32 1.0, %v129
    %v131 = vmul.f32 %v128, %v130
    %v132 = vadd.f32 %v128, %v131
    %vm133 = vweird.f32 %v127
    %vm134 = vweird.f32 %v128
    %vm135 = vmor %vm133, %vm134
    %v136 = vsel %vm135, %v128, %v132
    %v137 = vand.u32 2147483647, %v127
    %vm138 = vcmp.eq.f32.partialorder %v137, 8.507059e+37
    %v139 = vand.u32 %v127, 2147483648
    %v140 = vor.u32 1.1754944e-38, %v139
    %v141 = vsel %vm138, %v140, %v136
    %v142 = vmul.f32 1.0, %v141
    %v143 = vtanh.pop %v123
    %v144 = vmul.f32 %v142, 0.0
    %146 = vrot.lane.b32.xlu0 %v143, 32
    %v147 = vpop.permute.xlu0 %146
    %v149 = vmul.f32 %v142, %v147
    %151 = vrot.lane.b32.xlu0 %v149, 32
    %v152 = vpop.permute.xlu0 %151
    %v154 = vadd.f32 %v144, %v152
    %v155 = vtanh.pop %v154
    %157 = vrot.lane.b32.xlu0 %v155, 32
    %v158 = vpop.permute.xlu0 %157
    %v160 = vmul.f32 %v142, %v158
    %162 = vrot.lane.b32.xlu0 %v160, 64
    %v163 = vpop.permute.xlu0 %162
    %165 = vst.msk [vmem:[#allocation8] sm:$0xff] %vm76, %v163
    %v166 = vsel %vm76, %v163, 0
    %168 = vmatpush.msra.mxu0 0.0
    %169 = vmatpush.msra.mxu0 0.0
    %170 = vmatpush.msra.mxu0 0.0
    %171 = vmatpush.msra.mxu0 0.0
    %172 = vmatpush.msra.mxu0 0.0
    %173 = vmatpush.msra.mxu0 0.0
    %174 = vmatpush.msra.mxu0 0.0
    %175 = vmatpush.msra.mxu0 0.0
    %176 = vmatpush.msra.mxu0 0.0
    %177 = vmatpush.msra.mxu0 0.0
    %178 = vmatpush.msra.mxu0 0.0
    %179 = vmatpush.msra.mxu0 0.0
    %180 = vmatpush.msra.mxu0 %v70
    %181 = vmatpush.msra.mxu0 %v69
    %182 = vmatpush.msra.mxu0 %v68
    %183 = vmatpush.msra.mxu0 %v67
    %184 = vmatmul.f32.gmra.mxu0 %v166
    %v185 = vpop.f32.mrf.mxu0
    %v186 = vadd.f32 0.0, %v185
    %187 = vdwg.mxu0
    %v188 = vadd.f32 %v98, %v186
    %v189 = vxor.u32 %v188, 2147483648
    %v190 = vmul.f32 %v189, 1.442695
    %v191 = vpow.pop %v190
    %v192 = vadd.f32 %v191, 1.0
    %v193 = vrcp.pop %v192
    %v194 = vmul.f32 %v192, %v193
    %v195 = vsub.f32 1.0, %v194
    %v196 = vmul.f32 %v193, %v195
    %v197 = vadd.f32 %v193, %v196
    %vm198 = vweird.f32 %v192
    %vm199 = vweird.f32 %v193
    %vm200 = vmor %vm198, %vm199
    %v201 = vsel %vm200, %v193, %v197
    %v202 = vand.u32 2147483647, %v192
    %vm203 = vcmp.eq.f32.partialorder %v202, 8.507059e+37
    %v204 = vand.u32 %v192, 2147483648
    %v205 = vor.u32 1.1754944e-38, %v204
    %v206 = vsel %vm203, %v205, %v201
    %v207 = vmul.f32 1.0, %v206
    %v208 = vtanh.pop %v188
    %v209 = vmul.f32 %v207, %v154
    %211 = vrot.lane.b32.xlu0 %v208, 32
    %v212 = vpop.permute.xlu0 %211
    %v214 = vmul.f32 %v207, %v212
    %216 = vrot.lane.b32.xlu0 %v214, 32
    %v217 = vpop.permute.xlu0 %216
    %v219 = vadd.f32 %v209, %v217
    %v220 = vtanh.pop %v219
    %222 = vrot.lane.b32.xlu0 %v220, 32
    %v223 = vpop.permute.xlu0 %222
    %v225 = vmul.f32 %v207, %v223
    %227 = vrot.lane.b32.xlu0 %v225, 96
    %v228 = vpop.permute.xlu0 %227
    %vm230 = vcmask 523520
    %231 = vst.msk [vmem:[#allocation8] sm:$0xff] %vm230, %v228
    %232 = vrot.lane.b32.xlu0 %v225, 64
    %v233 = vpop.permute.xlu0 %232
    %v234 = vsel %vm76, %v233, 0
    %236 = vmatpush.msra.mxu0 0.0
    %237 = vmatpush.msra.mxu0 0.0
    %238 = vmatpush.msra.mxu0 0.0
    %239 = vmatpush.msra.mxu0 0.0
    %240 = vmatpush.msra.mxu0 0.0
    %241 = vmatpush.msra.mxu0 0.0
    %242 = vmatpush.msra.mxu0 0.0
    %243 = vmatpush.msra.mxu0 0.0
    %244 = vmatpush.msra.mxu0 0.0
    %245 = vmatpush.msra.mxu0 0.0
    %246 = vmatpush.msra.mxu0 0.0
    %247 = vmatpush.msra.mxu0 0.0
    %248 = vmatpush.msra.mxu0 %v70
    %249 = vmatpush.msra.mxu0 %v69
    %250 = vmatpush.msra.mxu0 %v68
    %251 = vmatpush.msra.mxu0 %v67
    %252 = vmatmul.f32.gmra.mxu0 %v234
    %v253 = vpop.f32.mrf.mxu0
    %v254 = vadd.f32 0.0, %v253
    %255 = vdwg.mxu0
    %v256 = vadd.f32 %v98, %v254
    %v257 = vxor.u32 %v256, 2147483648
    %v258 = vmul.f32 %v257, 1.442695
    %v259 = vpow.pop %v258
    %v260 = vadd.f32 %v259, 1.0
    %v261 = vrcp.pop %v260
    %v262 = vmul.f32 %v260, %v261
    %v263 = vsub.f32 1.0, %v262
    %v264 = vmul.f32 %v261, %v263
    %v265 = vadd.f32 %v261, %v264
    %vm266 = vweird.f32 %v260
    %vm267 = vweird.f32 %v261
    %vm268 = vmor %vm266, %vm267
    %v269 = vsel %vm268, %v261, %v265
    %v270 = vand.u32 2147483647, %v260
    %vm271 = vcmp.eq.f32.partialorder %v270, 8.507059e+37
    %v272 = vand.u32 %v260, 2147483648
    %v273 = vor.u32 1.1754944e-38, %v272
    %v274 = vsel %vm271, %v273, %v269
    %v275 = vmul.f32 1.0, %v274
    %v276 = vtanh.pop %v256
    %v277 = vmul.f32 %v275, %v219
    %279 = vrot.lane.b32.xlu0 %v276, 32
    %v280 = vpop.permute.xlu0 %279
    %v282 = vmul.f32 %v275, %v280
    %284 = vrot.lane.b32.xlu0 %v282, 32
    %v285 = vpop.permute.xlu0 %284
    %v287 = vadd.f32 %v277, %v285
    %v288 = vtanh.pop %v287
    %290 = vrot.lane.b32.xlu0 %v288, 32
    %v291 = vpop.permute.xlu0 %290
    %v293 = vmul.f32 %v275, %v291
    %vm294 = vcmask 785920
    %295 = vst.msk [vmem:[#allocation8] sm:$0xff] %vm294, %v293
    %297 = vrot.lane.b32.xlu0 %v293, 64
    %v298 = vpop.permute.xlu0 %297
    %v299 = vsel %vm76, %v298, 0
    %301 = vmatpush.msra.mxu0 0.0
    %302 = vmatpush.msra.mxu0 0.0
    %303 = vmatpush.msra.mxu0 0.0
    %304 = vmatpush.msra.mxu0 0.0
    %305 = vmatpush.msra.mxu0 0.0
    %306 = vmatpush.msra.mxu0 0.0
    %307 = vmatpush.msra.mxu0 0.0
    %308 = vmatpush.msra.mxu0 0.0
    %309 = vmatpush.msra.mxu0 0.0
    %310 = vmatpush.msra.mxu0 0.0
    %311 = vmatpush.msra.mxu0 0.0
    %312 = vmatpush.msra.mxu0 0.0
    %313 = vmatpush.msra.mxu0 %v70
    %314 = vmatpush.msra.mxu0 %v69
    %315 = vmatpush.msra.mxu0 %v68
    %316 = vmatpush.msra.mxu0 %v67
    %317 = vmatmul.f32.gmra.mxu0 %v299
    %v318 = vpop.f32.mrf.mxu0
    %v319 = vadd.f32 0.0, %v318
    %320 = vdwg.mxu0
    %v321 = vadd.f32 %v98, %v319
    %v322 = vxor.u32 %v321, 2147483648
    %v323 = vmul.f32 %v322, 1.442695
    %v324 = vpow.pop %v323
    %v325 = vadd.f32 %v324, 1.0
    %v326 = vrcp.pop %v325
    %v327 = vmul.f32 %v325, %v326
    %v328 = vsub.f32 1.0, %v327
    %v329 = vmul.f32 %v326, %v328
    %v330 = vadd.f32 %v326, %v329
    %vm331 = vweird.f32 %v325
    %vm332 = vweird.f32 %v326
    %vm333 = vmor %vm331, %vm332
    %v334 = vsel %vm333, %v326, %v330
    %v335 = vand.u32 2147483647, %v325
    %vm336 = vcmp.eq.f32.partialorder %v335, 8.507059e+37
    %v337 = vand.u32 %v325, 2147483648
    %v338 = vor.u32 1.1754944e-38, %v337
    %v339 = vsel %vm336, %v338, %v334
    %v340 = vmul.f32 1.0, %v339
    %v341 = vtanh.pop %v321
    %v342 = vmul.f32 %v340, %v287
    %344 = vrot.lane.b32.xlu0 %v341, 32
    %v345 = vpop.permute.xlu0 %344
    %v347 = vmul.f32 %v340, %v345
    %349 = vrot.lane.b32.xlu0 %v347, 32
    %v350 = vpop.permute.xlu0 %349
    %v352 = vadd.f32 %v342, %v350
    %v353 = vtanh.pop %v352
    %355 = vrot.lane.b32.xlu0 %v353, 32
    %v356 = vpop.permute.xlu0 %355
    %v358 = vmul.f32 %v340, %v356
    %360 = vrot.lane.b32.xlu0 %v358, 32
    %v361 = vpop.permute.xlu0 %360
    %vm363 = vcmask 1048320
    %364 = vst.msk [vmem:[#allocation8] sm:$0xff] %vm363, %v361
    %365 = vrot.lane.b32.xlu0 %v358, 64
    %v366 = vpop.permute.xlu0 %365
    %v367 = vsel %vm76, %v366, 0
    %369 = vmatpush.msra.mxu0 0.0
    %370 = vmatpush.msra.mxu0 0.0
    %371 = vmatpush.msra.mxu0 0.0
    %372 = vmatpush.msra.mxu0 0.0
    %373 = vmatpush.msra.mxu0 0.0
    %374 = vmatpush.msra.mxu0 0.0
    %375 = vmatpush.msra.mxu0 0.0
    %376 = vmatpush.msra.mxu0 0.0
    %377 = vmatpush.msra.mxu0 0.0
    %378 = vmatpush.msra.mxu0 0.0
    %379 = vmatpush.msra.mxu0 0.0
    %380 = vmatpush.msra.mxu0 0.0
    %381 = vmatpush.msra.mxu0 %v70
    %382 = vmatpush.msra.mxu0 %v69
    %383 = vmatpush.msra.mxu0 %v68
    %384 = vmatpush.msra.mxu0 %v67
    %385 = vmatmul.f32.gmra.mxu0 %v367
    %v386 = vpop.f32.mrf.mxu0
    %v387 = vadd.f32 0.0, %v386
    %388 = vdwg.mxu0
    %v389 = vadd.f32 %v98, %v387
    %v390 = vxor.u32 %v389, 2147483648
    %v391 = vmul.f32 %v390, 1.442695
    %v392 = vpow.pop %v391
    %v393 = vadd.f32 %v392, 1.0
    %v394 = vrcp.pop %v393
    %v395 = vmul.f32 %v393, %v394
    %v396 = vsub.f32 1.0, %v395
    %v397 = vmul.f32 %v394, %v396
    %v398 = vadd.f32 %v394, %v397
    %vm399 = vweird.f32 %v393
    %vm400 = vweird.f32 %v394
    %vm401 = vmor %vm399, %vm400
    %v402 = vsel %vm401, %v394, %v398
    %v403 = vand.u32 2147483647, %v393
    %vm404 = vcmp.eq.f32.partialorder %v403, 8.507059e+37
    %v405 = vand.u32 %v393, 2147483648
    %v406 = vor.u32 1.1754944e-38, %v405
    %v407 = vsel %vm404, %v406, %v402
    %v408 = vmul.f32 1.0, %v407
    %v409 = vtanh.pop %v389
    %v410 = vmul.f32 %v408, %v352
    %412 = vrot.lane.b32.xlu0 %v409, 32
    %v413 = vpop.permute.xlu0 %412
    %v415 = vmul.f32 %v408, %v413
    %417 = vrot.lane.b32.xlu0 %v415, 32
    %v418 = vpop.permute.xlu0 %417
    %v420 = vadd.f32 %v410, %v418
    %v421 = vtanh.pop %v420
    %423 = vrot.lane.b32.xlu0 %v421, 32
    %v424 = vpop.permute.xlu0 %423
    %v426 = vmul.f32 %v408, %v424
    %428 = vrot.lane.b32.xlu0 %v426, 64
    %v429 = vpop.permute.xlu0 %428
    %431 = vst.msk [vmem:[#allocation8 + $0x8] sm:$0xff] %vm76, %v429
    %v432 = vsel %vm76, %v429, 0
    %434 = vmatpush.msra.mxu0 0.0
    %435 = vmatpush.msra.mxu0 0.0
    %436 = vmatpush.msra.mxu0 0.0
    %437 = vmatpush.msra.mxu0 0.0
    %438 = vmatpush.msra.mxu0 0.0
    %439 = vmatpush.msra.mxu0 0.0
    %440 = vmatpush.msra.mxu0 0.0
    %441 = vmatpush.msra.mxu0 0.0
    %442 = vmatpush.msra.mxu0 0.0
    %443 = vmatpush.msra.mxu0 0.0
    %444 = vmatpush.msra.mxu0 0.0
    %445 = vmatpush.msra.mxu0 0.0
    %446 = vmatpush.msra.mxu0 %v70
    %447 = vmatpush.msra.mxu0 %v69
    %448 = vmatpush.msra.mxu0 %v68
    %449 = vmatpush.msra.mxu0 %v67
    %450 = vmatmul.f32.gmra.mxu0 %v432
    %v451 = vpop.f32.mrf.mxu0
    %v452 = vadd.f32 0.0, %v451
    %453 = vdwg.mxu0
    %v454 = vadd.f32 %v98, %v452
    %v455 = vxor.u32 %v454, 2147483648
    %v456 = vmul.f32 %v455, 1.442695
    %v457 = vpow.pop %v456
    %v458 = vadd.f32 %v457, 1.0
    %v459 = vrcp.pop %v458
    %v460 = vmul.f32 %v458, %v459
    %v461 = vsub.f32 1.0, %v460
    %v462 = vmul.f32 %v459, %v461
    %v463 = vadd.f32 %v459, %v462
    %vm464 = vweird.f32 %v458
    %vm465 = vweird.f32 %v459
    %vm466 = vmor %vm464, %vm465
    %v467 = vsel %vm466, %v459, %v463
    %v468 = vand.u32 2147483647, %v458
    %vm469 = vcmp.eq.f32.partialorder %v468, 8.507059e+37
    %v470 = vand.u32 %v458, 2147483648
    %v471 = vor.u32 1.1754944e-38, %v470
    %v472 = vsel %vm469, %v471, %v467
    %v473 = vmul.f32 1.0, %v472
    %v474 = vtanh.pop %v454
    %v475 = vmul.f32 %v473, %v420
    %477 = vrot.lane.b32.xlu0 %v474, 32
    %v478 = vpop.permute.xlu0 %477
    %v480 = vmul.f32 %v473, %v478
    %482 = vrot.lane.b32.xlu0 %v480, 32
    %v483 = vpop.permute.xlu0 %482
    %v485 = vadd.f32 %v475, %v483
    %v486 = vtanh.pop %v485
    %488 = vrot.lane.b32.xlu0 %v486, 32
    %v489 = vpop.permute.xlu0 %488
    %v491 = vmul.f32 %v473, %v489
    %493 = vrot.lane.b32.xlu0 %v491, 96
    %v494 = vpop.permute.xlu0 %493
    %496 = vst.msk [vmem:[#allocation8 + $0x8] sm:$0xff] %vm230, %v494
    %497 = vrot.lane.b32.xlu0 %v491, 64
    %v498 = vpop.permute.xlu0 %497
    %v499 = vsel %vm76, %v498, 0
    %501 = vmatpush.msra.mxu0 0.0
    %502 = vmatpush.msra.mxu0 0.0
    %503 = vmatpush.msra.mxu0 0.0
    %504 = vmatpush.msra.mxu0 0.0
    %505 = vmatpush.msra.mxu0 0.0
    %506 = vmatpush.msra.mxu0 0.0
    %507 = vmatpush.msra.mxu0 0.0
    %508 = vmatpush.msra.mxu0 0.0
    %509 = vmatpush.msra.mxu0 0.0
    %510 = vmatpush.msra.mxu0 0.0
    %511 = vmatpush.msra.mxu0 0.0
    %512 = vmatpush.msra.mxu0 0.0
    %513 = vmatpush.msra.mxu0 %v70
    %514 = vmatpush.msra.mxu0 %v69
    %515 = vmatpush.msra.mxu0 %v68
    %516 = vmatpush.msra.mxu0 %v67
    %517 = vmatmul.f32.gmra.mxu0 %v499
    %v518 = vpop.f32.mrf.mxu0
    %v519 = vadd.f32 0.0, %v518
    %520 = vdwg.mxu0
    %v521 = vadd.f32 %v98, %v519
    %v522 = vxor.u32 %v521, 2147483648
    %v523 = vmul.f32 %v522, 1.442695
    %v524 = vpow.pop %v523
    %v525 = vadd.f32 %v524, 1.0
    %v526 = vrcp.pop %v525
    %v527 = vmul.f32 %v525, %v526
    %v528 = vsub.f32 1.0, %v527
    %v529 = vmul.f32 %v526, %v528
    %v530 = vadd.f32 %v526, %v529
    %vm531 = vweird.f32 %v525
    %vm532 = vweird.f32 %v526
    %vm533 = vmor %vm531, %vm532
    %v534 = vsel %vm533, %v526, %v530
    %v535 = vand.u32 2147483647, %v525
    %vm536 = vcmp.eq.f32.partialorder %v535, 8.507059e+37
    %v537 = vand.u32 %v525, 2147483648
    %v538 = vor.u32 1.1754944e-38, %v537
    %v539 = vsel %vm536, %v538, %v534
    %v540 = vmul.f32 1.0, %v539
    %v541 = vtanh.pop %v521
    %v542 = vmul.f32 %v540, %v485
    %544 = vrot.lane.b32.xlu0 %v541, 32
    %v545 = vpop.permute.xlu0 %544
    %v547 = vmul.f32 %v540, %v545
    %549 = vrot.lane.b32.xlu0 %v547, 32
    %v550 = vpop.permute.xlu0 %549
    %v552 = vadd.f32 %v542, %v550
    %v553 = vtanh.pop %v552
    %555 = vrot.lane.b32.xlu0 %v553, 32
    %v556 = vpop.permute.xlu0 %555
    %v558 = vmul.f32 %v540, %v556
    %559 = vst.msk [vmem:[#allocation8 + $0x8] sm:$0xff] %vm294, %v558
    %561 = vrot.lane.b32.xlu0 %v558, 64
    %v562 = vpop.permute.xlu0 %561
    %v563 = vsel %vm76, %v562, 0
    %565 = vmatpush.msra.mxu0 0.0
    %566 = vmatpush.msra.mxu0 0.0
    %567 = vmatpush.msra.mxu0 0.0
    %568 = vmatpush.msra.mxu0 0.0
    %569 = vmatpush.msra.mxu0 0.0
    %570 = vmatpush.msra.mxu0 0.0
    %571 = vmatpush.msra.mxu0 0.0
    %572 = vmatpush.msra.mxu0 0.0
    %573 = vmatpush.msra.mxu0 0.0
    %574 = vmatpush.msra.mxu0 0.0
    %575 = vmatpush.msra.mxu0 0.0
    %576 = vmatpush.msra.mxu0 0.0
    %577 = vmatpush.msra.mxu0 %v70
    %578 = vmatpush.msra.mxu0 %v69
    %579 = vmatpush.msra.mxu0 %v68
    %580 = vmatpush.msra.mxu0 %v67
    %581 = vmatmul.f32.gmra.mxu0 %v563
    %v582 = vpop.f32.mrf.mxu0
    %v583 = vadd.f32 0.0, %v582
    %584 = vdwg.mxu0
    %v585 = vadd.f32 %v98, %v583
    %v586 = vxor.u32 %v585, 2147483648
    %v587 = vmul.f32 %v586, 1.442695
    %v588 = vpow.pop %v587
    %v589 = vadd.f32 %v588, 1.0
    %v590 = vrcp.pop %v589
    %v591 = vmul.f32 %v589, %v590
    %v592 = vsub.f32 1.0, %v591
    %v593 = vmul.f32 %v590, %v592
    %v594 = vadd.f32 %v590, %v593
    %vm595 = vweird.f32 %v589
    %vm596 = vweird.f32 %v590
    %vm597 = vmor %vm595, %vm596
    %v598 = vsel %vm597, %v590, %v594
    %v599 = vand.u32 2147483647, %v589
    %vm600 = vcmp.eq.f32.partialorder %v599, 8.507059e+37
    %v601 = vand.u32 %v589, 2147483648
    %v602 = vor.u32 1.1754944e-38, %v601
    %v603 = vsel %vm600, %v602, %v598
    %v604 = vmul.f32 1.0, %v603
    %v605 = vtanh.pop %v585
    %v606 = vmul.f32 %v604, %v552
    %608 = vrot.lane.b32.xlu0 %v605, 32
    %v609 = vpop.permute.xlu0 %608
    %v611 = vmul.f32 %v604, %v609
    %613 = vrot.lane.b32.xlu0 %v611, 32
    %v614 = vpop.permute.xlu0 %613
    %v616 = vadd.f32 %v606, %v614
    %v617 = vtanh.pop %v616
    %619 = vrot.lane.b32.xlu0 %v617, 32
    %v620 = vpop.permute.xlu0 %619
    %v622 = vmul.f32 %v604, %v620
    %624 = vrot.lane.b32.xlu0 %v622, 32
    %v625 = vpop.permute.xlu0 %624
    %627 = vst.msk [vmem:[#allocation8 + $0x8] sm:$0xff] %vm363, %v625
    // Predicated region
    $region30: #{tpu_custom_call.1} parent=1 // pred_check
      _
    $region31: #{tpu_custom_call.1} parent=1 // pred_check_branch
      %629 = sbr.rel (0) target = $region33
    $region32: #{tpu_custom_call.1} parent=1 // pred_region
      %631 = vsyncadd [#allocation4], 0
      %s633 = sshll.u32 [#allocation8], 4
      %s634 = int_to_ptr.vmem [resolvable:$true] %s633
      %s635 = sshll.u32 %s4, 4
      %s636 = int_to_ptr.hbm [resolvable:$true] %s635
      %638 = dma.vmem_to_hbm [thread:$0]  %s634, 256, %s636, [#allocation4]
    $region33: #{tpu_custom_call.1} parent=1 // pred_fallthru
      _
    // Predicated region
    $region34: #{tpu_custom_call.1} parent=1 // pred_check
      _
    $region35: #{tpu_custom_call.1} parent=1 // pred_check_branch
      %640 = sbr.rel (0) target = $region37
    $region36: #{tpu_custom_call.1} parent=1 // pred_region
      %642 = dma.done [#allocation4], 256
    $region37: #{tpu_custom_call.1} parent=1 // pred_fallthru
      _
    %643 = vsyncpa [#allocation3], 1
    %644 = vsyncpa [#allocation6], 1
    %645 = vsyncpa [#allocation4], 1

</llo_original>
